<compile_context>
chip_gen: v6e
topology: v6e:2x2x1
jax: 0.10.0
libtpu: 0.0.40
codegen_flags: <defaults>
</compile_context>

<pallas_src>
import functools

import jax
import jax.numpy as jnp
from jax.experimental import pallas as pl
from jax.experimental.pallas import tpu as pltpu


def _round_up(x, m):
    return ((x + m - 1) // m) * m


def _mean_net_kernel(n_layers, compute_dtype, *refs):
    # refs = (obs_ref, W0, b0, W1, b1, ..., W_out, b_out, loc_ref)
    obs_ref = refs[0]
    wb_refs = refs[1 : 1 + 2 * (n_layers + 1)]
    loc_ref = refs[-1]

    # Cast to the matmul compute dtype in-vreg (free on the VPU); accumulate in f32.
    h = obs_ref[...].astype(compute_dtype)

    # Hidden layers: Linear -> Tanh.  Static Python unroll (fixed shapes visible to
    # the scheduler); bias add + tanh in f32, dot operands in compute_dtype.
    for layer in range(n_layers):
        w = wb_refs[2 * layer][...]
        b = wb_refs[2 * layer + 1][...]          # f32 (1, size)
        z = jnp.dot(h, w, preferred_element_type=jnp.float32) + b
        h = jnp.tanh(z).astype(compute_dtype)

    # Output layer: Linear (identity activation), written at native ac_dim width.
    w_out = wb_refs[2 * n_layers][...]
    b_out = wb_refs[2 * n_layers + 1][...]       # f32 (1, ac_dim)
    loc_ref[...] = jnp.dot(h, w_out, preferred_element_type=jnp.float32) + b_out


def prepare_params(weights, biases, compute_dtype=jnp.bfloat16):
    """One-time parameter prep (hoist out of the RL inner loop and reuse).

    weights[i]: (in_dim, out_dim)  (PyTorch Linear weight pre-transposed)
    biases[i]:  (out_dim,)
    Returns a flat tuple (W0, b0, W1, b1, ..., W_out, b_out) with weights in
    compute_dtype and biases as (1, out_dim) f32 rows.
    """
    prepped = []
    for w, b in zip(weights, biases):
        prepped.append(jnp.asarray(w, compute_dtype))
        prepped.append(jnp.asarray(b, jnp.float32).reshape(1, -1))
    return tuple(prepped)


def _choose_tile_b(batch, tile_b):
    # At least 2 grid steps when the batch allows it, so ("parallel",) can shard
    # tiles across both TensorCores on v7x (no-op on v5e/v6e).
    two_tc_cap = max(8, _round_up(pl.cdiv(batch, 2), 8))
    return max(8, min(_round_up(tile_b, 8), two_tc_cap))


def mlp_policy_forward(obs, weights, biases, logstd, *, tile_b=8192,
                       compute_dtype=jnp.bfloat16, prepared_params=None):
    """Fused mean_net forward. Returns (loc, scale) of the Normal distribution."""
    n_layers = len(weights) - 1
    batch, ob_dim = obs.shape
    ac_dim = weights[-1].shape[1]

    if prepared_params is None:
        prepared_params = prepare_params(weights, biases, compute_dtype)

    tile_b = _choose_tile_b(batch, tile_b)
    grid = (pl.cdiv(batch, tile_b),)             # last block may be partial

    # obs tiles streamed (f32, cast in kernel); tiny params resident via constant
    # block index.  (Could be concatenated into one resident input to cut DMA
    # descriptors further; left as separate refs for clarity.)
    in_specs = [pl.BlockSpec((tile_b, ob_dim), lambda i: (i, 0))]
    for p in prepared_params:
        in_specs.append(pl.BlockSpec(p.shape, lambda i: (0, 0)))
    out_specs = pl.BlockSpec((tile_b, ac_dim), lambda i: (i, 0))
    out_shape = jax.ShapeDtypeStruct((batch, ac_dim), jnp.float32)

    kernel = functools.partial(_mean_net_kernel, n_layers, compute_dtype)
    loc = pl.pallas_call(
        kernel,
        grid=grid,
        in_specs=in_specs,
        out_specs=out_specs,
        out_shape=out_shape,
        compiler_params=pltpu.CompilerParams(
            dimension_semantics=("parallel",),      # shard batch tiles across TCs (v7x)
            vmem_limit_bytes=32 * 1024 * 1024,      # safe on v5e/v6e/v7x; tiles are tiny
        ),
    )(obs, *prepared_params)

    # scale = exp(logstd): obs-independent, computed outside the kernel (hoisted).
    scale = jnp.broadcast_to(jnp.exp(logstd.astype(jnp.float32)), (batch, ac_dim))
    return loc, scale


def _reference_forward(obs, weights, biases, logstd):
    h = obs
    for w, b in zip(weights[:-1], biases[:-1]):
        h = jnp.tanh(h @ w + b)
    loc = h @ weights[-1] + biases[-1]
    scale = jnp.broadcast_to(jnp.exp(logstd), loc.shape)
    return loc, scale


def _reference_forward_bf16(obs, weights, biases, logstd):
    # Matches the kernel's precision choices: bf16 dot operands, f32 accumulate,
    # f32 bias add / tanh.
    h = obs.astype(jnp.bfloat16)
    for w, b in zip(weights[:-1], biases[:-1]):
        z = jnp.dot(h, w.astype(jnp.bfloat16),
                    preferred_element_type=jnp.float32) + b
        h = jnp.tanh(z).astype(jnp.bfloat16)
    loc = jnp.dot(h, weights[-1].astype(jnp.bfloat16),
                  preferred_element_type=jnp.float32) + biases[-1]
    scale = jnp.broadcast_to(jnp.exp(logstd), loc.shape)
    return loc, scale


if __name__ == "__main__":
    # Module hyper-parameters (small, consistent with MLPPolicy.__init__)
    batch = 8
    ob_dim = 16
    ac_dim = 8
    size = 32
    n_layers = 2
    discrete = False  # continuous branch of forward()

    key = jax.random.PRNGKey(0)
    k_obs, k_obs2, *k_params = jax.random.split(key, 3 + 2 * (n_layers + 1))

    obs = jax.random.normal(k_obs, (batch, ob_dim), dtype=jnp.float32)

    # Deterministic parameter init (synthetic; shapes match build_mlp of mean_net).
    dims = [ob_dim] + [size] * n_layers + [ac_dim]
    weights, biases = [], []
    for li, (din, dout) in enumerate(zip(dims[:-1], dims[1:])):
        kw = k_params[2 * li]
        kb = k_params[2 * li + 1]
        limit = 1.0 / jnp.sqrt(jnp.float32(din))
        weights.append(jax.random.uniform(kw, (din, dout), jnp.float32, -limit, limit))
        biases.append(jax.random.uniform(kb, (dout,), jnp.float32, -limit, limit))
    logstd = jnp.zeros((ac_dim,), dtype=jnp.float32)  # nn.Parameter(torch.zeros(ac_dim))

    # TODO(synk): discrete branch (softmax -> Categorical) and multivariate branch
    # (diag scale_tril MultivariateNormal) construct torch distribution objects; the
    # distribution/sampling itself stays on the host, only the mean_net is kernelized.

    # --- single-tile case (batch == tile), bf16 fast path ---------------------
    loc, scale = mlp_policy_forward(obs, weights, biases, logstd)
    jax.block_until_ready((loc, scale))

    ref_loc, ref_scale = _reference_forward(obs, weights, biases, logstd)
    ref_loc_bf16, _ = _reference_forward_bf16(obs, weights, biases, logstd)
    assert loc.shape == (batch, ac_dim) and scale.shape == (batch, ac_dim)
    # Tight check against a precision-matched (bf16 dot / f32 accumulate) reference.
    assert jnp.allclose(loc, ref_loc_bf16, atol=1e-3, rtol=1e-3)
    # Loose check against the pure-f32 PyTorch-semantics reference.
    assert jnp.allclose(loc, ref_loc, atol=5e-2, rtol=5e-2)
    assert jnp.allclose(scale, ref_scale, atol=1e-6, rtol=1e-6)

    # --- exact-f32 path (compute_dtype gate for PyTorch-faithful semantics) ---
    loc_f32, _ = mlp_policy_forward(obs, weights, biases, logstd,
                                    compute_dtype=jnp.float32)
    jax.block_until_ready(loc_f32)
    assert jnp.allclose(loc_f32, ref_loc, atol=1e-3, rtol=1e-3)

    # --- multi-tile case: partial last block + cached prepared params ---------
    batch2 = 20
    obs2 = jax.random.normal(k_obs2, (batch2, ob_dim), dtype=jnp.float32)
    cached_params = prepare_params(weights, biases)   # hoisted once, reused per call
    loc2, scale2 = mlp_policy_forward(obs2, weights, biases, logstd, tile_b=8,
                                      prepared_params=cached_params)
    jax.block_until_ready((loc2, scale2))
    ref_loc2, ref_scale2 = _reference_forward(obs2, weights, biases, logstd)
    assert loc2.shape == (batch2, ac_dim) and scale2.shape == (batch2, ac_dim)
    assert jnp.allclose(loc2, ref_loc2, atol=5e-2, rtol=5e-2)
    assert jnp.allclose(scale2, ref_scale2, atol=1e-6, rtol=1e-6)

    print("KERNEL_OK")
</pallas_src>

<mosaic_0001>
module attributes {stable_mosaic.version = 11 : i64} {
  func.func @_mean_net_kernel(%arg0: i32, %arg1: memref<8x16xf32, #tpu.memory_space<vmem>>, %arg2: memref<16x32xbf16, #tpu.memory_space<vmem>>, %arg3: memref<1x32xf32, #tpu.memory_space<vmem>>, %arg4: memref<32x32xbf16, #tpu.memory_space<vmem>>, %arg5: memref<1x32xf32, #tpu.memory_space<vmem>>, %arg6: memref<32x8xbf16, #tpu.memory_space<vmem>>, %arg7: memref<1x8xf32, #tpu.memory_space<vmem>>, %arg8: memref<8x8xf32, #tpu.memory_space<vmem>>) attributes {dimension_semantics = [#tpu.dimension_semantics<parallel>], iteration_bounds = array<i64: 1>, scalar_prefetch = 0 : i64, scratch_operands = 0 : i64, tpu.core_type = #tpu.core_type<tc>, window_params = [{transform_indices = @transform_0, window_bounds = array<i64: 8, 16>}, {pipeline_mode = #tpu.pipeline_mode<synchronous>, transform_indices = @transform_1, window_bounds = array<i64: 16, 32>}, {pipeline_mode = #tpu.pipeline_mode<synchronous>, transform_indices = @transform_2, window_bounds = array<i64: 1, 32>}, {pipeline_mode = #tpu.pipeline_mode<synchronous>, transform_indices = @transform_3, window_bounds = array<i64: 32, 32>}, {pipeline_mode = #tpu.pipeline_mode<synchronous>, transform_indices = @transform_4, window_bounds = array<i64: 1, 32>}, {pipeline_mode = #tpu.pipeline_mode<synchronous>, transform_indices = @transform_5, window_bounds = array<i64: 32, 8>}, {pipeline_mode = #tpu.pipeline_mode<synchronous>, transform_indices = @transform_6, window_bounds = array<i64: 1, 8>}, {transform_indices = @transform_7, window_bounds = array<i64: 8, 8>}]} {
    %c0 = arith.constant 0 : index
    %c0_0 = arith.constant 0 : index
    %0 = vector.load %arg1[%c0, %c0_0] : memref<8x16xf32, #tpu.memory_space<vmem>>, vector<8x16xf32>
    %1 = arith.truncf %0 : vector<8x16xf32> to vector<8x16xbf16>
    %c0_1 = arith.constant 0 : index
    %c0_2 = arith.constant 0 : index
    %2 = vector.load %arg2[%c0_1, %c0_2] : memref<16x32xbf16, #tpu.memory_space<vmem>>, vector<16x32xbf16>
    %c0_3 = arith.constant 0 : index
    %c0_4 = arith.constant 0 : index
    %3 = vector.load %arg3[%c0_3, %c0_4] : memref<1x32xf32, #tpu.memory_space<vmem>>, vector<1x32xf32>
    %cst = arith.constant dense<0.000000e+00> : vector<8x32xf32>
    %4 = tpu.matmul %1, %2, %cst {dimension_numbers = #tpu.dot_dimension_numbers<[1], [0], [0], [1], [0, 0, 1, 1], [], []>} : vector<8x16xbf16>, vector<16x32xbf16>, vector<8x32xf32> -> vector<8x32xf32>
    %5 = vector.broadcast %3 : vector<1x32xf32> to vector<8x32xf32>
    %6 = arith.addf %4, %5 : vector<8x32xf32>
    %7 = math.tanh %6 : vector<8x32xf32>
    %8 = arith.truncf %7 : vector<8x32xf32> to vector<8x32xbf16>
    %c0_5 = arith.constant 0 : index
    %c0_6 = arith.constant 0 : index
    %9 = vector.load %arg4[%c0_5, %c0_6] : memref<32x32xbf16, #tpu.memory_space<vmem>>, vector<32x32xbf16>
    %c0_7 = arith.constant 0 : index
    %c0_8 = arith.constant 0 : index
    %10 = vector.load %arg5[%c0_7, %c0_8] : memref<1x32xf32, #tpu.memory_space<vmem>>, vector<1x32xf32>
    %cst_9 = arith.constant dense<0.000000e+00> : vector<8x32xf32>
    %11 = tpu.matmul %8, %9, %cst_9 {dimension_numbers = #tpu.dot_dimension_numbers<[1], [0], [0], [1], [0, 0, 1, 1], [], []>} : vector<8x32xbf16>, vector<32x32xbf16>, vector<8x32xf32> -> vector<8x32xf32>
    %12 = vector.broadcast %10 : vector<1x32xf32> to vector<8x32xf32>
    %13 = arith.addf %11, %12 : vector<8x32xf32>
    %14 = math.tanh %13 : vector<8x32xf32>
    %15 = arith.truncf %14 : vector<8x32xf32> to vector<8x32xbf16>
    %c0_10 = arith.constant 0 : index
    %c0_11 = arith.constant 0 : index
    %16 = vector.load %arg6[%c0_10, %c0_11] : memref<32x8xbf16, #tpu.memory_space<vmem>>, vector<32x8xbf16>
    %c0_12 = arith.constant 0 : index
    %c0_13 = arith.constant 0 : index
    %17 = vector.load %arg7[%c0_12, %c0_13] : memref<1x8xf32, #tpu.memory_space<vmem>>, vector<1x8xf32>
    %cst_14 = arith.constant dense<0.000000e+00> : vector<8x8xf32>
    %18 = tpu.matmul %15, %16, %cst_14 {dimension_numbers = #tpu.dot_dimension_numbers<[1], [0], [0], [1], [0, 0, 1, 1], [], []>} : vector<8x32xbf16>, vector<32x8xbf16>, vector<8x8xf32> -> vector<8x8xf32>
    %19 = vector.broadcast %17 : vector<1x8xf32> to vector<8x8xf32>
    %20 = arith.addf %18, %19 : vector<8x8xf32>
    %c0_15 = arith.constant 0 : index
    %c0_16 = arith.constant 0 : index
    %21 = vector.load %arg8[%c0_15, %c0_16] : memref<8x8xf32, #tpu.memory_space<vmem>>, vector<8x8xf32>
    tpu.vector_store %arg8[%c0_15, %c0_16], %20 {strides = array<i32>} : memref<8x8xf32, #tpu.memory_space<vmem>>, vector<8x8xf32>,
    return
  }
  func.func @transform_0(%arg0: i32) -> (i32, i32) {
    %c0_i32 = arith.constant 0 : i32
    %c0_i32_0 = arith.constant 0 : i32
    return %arg0, %c0_i32 : i32, i32
  }
  func.func @transform_1(%arg0: i32) -> (i32, i32) {
    %c0_i32 = arith.constant 0 : i32
    %c0_i32_0 = arith.constant 0 : i32
    %c0_i32_1 = arith.constant 0 : i32
    return %c0_i32, %c0_i32_0 : i32, i32
  }
  func.func @transform_2(%arg0: i32) -> (i32, i32) {
    %c0_i32 = arith.constant 0 : i32
    %c0_i32_0 = arith.constant 0 : i32
    %c0_i32_1 = arith.constant 0 : i32
    return %c0_i32, %c0_i32_0 : i32, i32
  }
  func.func @transform_3(%arg0: i32) -> (i32, i32) {
    %c0_i32 = arith.constant 0 : i32
    %c0_i32_0 = arith.constant 0 : i32
    %c0_i32_1 = arith.constant 0 : i32
    return %c0_i32, %c0_i32_0 : i32, i32
  }
  func.func @transform_4(%arg0: i32) -> (i32, i32) {
    %c0_i32 = arith.constant 0 : i32
    %c0_i32_0 = arith.constant 0 : i32
    %c0_i32_1 = arith.constant 0 : i32
    return %c0_i32, %c0_i32_0 : i32, i32
  }
  func.func @transform_5(%arg0: i32) -> (i32, i32) {
    %c0_i32 = arith.constant 0 : i32
    %c0_i32_0 = arith.constant 0 : i32
    %c0_i32_1 = arith.constant 0 : i32
    return %c0_i32, %c0_i32_0 : i32, i32
  }
  func.func @transform_6(%arg0: i32) -> (i32, i32) {
    %c0_i32 = arith.constant 0 : i32
    %c0_i32_0 = arith.constant 0 : i32
    %c0_i32_1 = arith.constant 0 : i32
    return %c0_i32, %c0_i32_0 : i32, i32
  }
  func.func @transform_7(%arg0: i32) -> (i32, i32) {
    %c0_i32 = arith.constant 0 : i32
    %c0_i32_0 = arith.constant 0 : i32
    return %arg0, %c0_i32 : i32, i32
  }
}

</mosaic_0001>

<llo_original>
// kernel: tpu_custom_call.1
$region0: #{tpu_custom_call.1}
  #allocation0 [shape = 'u32[]', space=smem, size = 0x4, offset = 0x4, fixed_abs, tag = 'smem constant byte address 0x4 - core index']
  #allocation1 [shape = 'u32[144,128]{1,0:T(1,128)}', space=vmem, size = 0x12000, scoped, tag = 'internal scratch']
  %s0 = inlined_call_operand.vmem [shape: f32[8,16], index: 0, kind: input, shape index: {}]
  %s1 = inlined_call_operand.hbm [shape: bf16[16,32], index: 1, kind: input, shape index: {}]
  %s2 = inlined_call_operand.vmem [shape: f32[1,32], index: 2, kind: input, shape index: {}]
  %s3 = inlined_call_operand.vmem [shape: bf16[32,32], index: 3, kind: input, shape index: {}]
  %s4 = inlined_call_operand.hbm [shape: f32[1,32], index: 4, kind: input, shape index: {}]
  %s5 = inlined_call_operand.vmem [shape: bf16[32,8], index: 5, kind: input, shape index: {}]
  %s6 = inlined_call_operand.vmem [shape: f32[1,8], index: 6, kind: input, shape index: {}]
  %s7 = inlined_call_operand.hbm [shape: f32[8,8], index: 7, kind: output, shape index: {}]
  %s8 = sld [smem:[#allocation0]]
  $region46: #{tpu_custom_call.1} parent=0
    _
  %s10 = ssub.s32 1, %s8
  %s11 = scalar_select 0, %s10, %s8
  $region1: #{tpu_custom_call.1} parent=0
    #allocation2 [shape = 'u8[4096]{0}', space=vmem, size = 0x1000, scoped, tag = 'input window, operand 1, single buffered']
    #allocation3 [shape = 's32[1]{0}', space=sflag, size = 0x4, scoped, tag = 'scoped memory for tpu_custom_call.1']
    #allocation4 [shape = 's32[1]{0}', space=sflag, size = 0x4, scoped, tag = 'scoped memory for tpu_custom_call.1']
    #allocation5 [shape = 'u8[512]{0}', space=vmem, size = 0x400, scoped, tag = 'input window, operand 4, single buffered']
    #allocation6 [shape = 's32[1]{0}', space=sflag, size = 0x4, scoped, tag = 'scoped memory for tpu_custom_call.1']
    #allocation7 [shape = 'u8[4096]{0}', space=vmem, size = 0x1000, scoped, tag = 'output window, operand 0, single buffered']
    %12 = vsyncpa [#allocation3], 0
    %13 = vsyncpa [#allocation6], 0
    %14 = vsyncpa [#allocation4], 0
    // Predicated region
    $region2: #{tpu_custom_call.1} parent=1 // pred_check
      _
    $region3: #{tpu_custom_call.1} parent=1 // pred_check_branch
      %16 = sbr.rel (0) target = $region5
    $region4: #{tpu_custom_call.1} parent=1 // pred_region
      _
    $region5: #{tpu_custom_call.1} parent=1 // pred_fallthru
      _
    // Predicated region
    $region6: #{tpu_custom_call.1} parent=1 // pred_check
      _
    $region7: #{tpu_custom_call.1} parent=1 // pred_check_branch
      %18 = sbr.rel (0) target = $region9
    $region8: #{tpu_custom_call.1} parent=1 // pred_region
      %s20 = ssub.s32 128, 128
      %21 = vsyncadd [#allocation3], %s20
      %s22 = sshll.u32 [#allocation2], 4
      %s23 = int_to_ptr.vmem [resolvable:$true] %s22
      %28 = dma.hbm_to_vmem [thread:$0]  %s1, 128, %s23, [#allocation3], 64, 64, 4
    $region9: #{tpu_custom_call.1} parent=1 // pred_fallthru
      _
    // Predicated region
    $region10: #{tpu_custom_call.1} parent=1 // pred_check
      _
    $region11: #{tpu_custom_call.1} parent=1 // pred_check_branch
      %30 = sbr.rel (0) target = $region13
    $region12: #{tpu_custom_call.1} parent=1 // pred_region
      _
    $region13: #{tpu_custom_call.1} parent=1 // pred_fallthru
      _
    // Predicated region
    $region14: #{tpu_custom_call.1} parent=1 // pred_check
      _
    $region15: #{tpu_custom_call.1} parent=1 // pred_check_branch
      %32 = sbr.rel (0) target = $region17
    $region16: #{tpu_custom_call.1} parent=1 // pred_region
      _
    $region17: #{tpu_custom_call.1} parent=1 // pred_fallthru
      _
    // Predicated region
    $region18: #{tpu_custom_call.1} parent=1 // pred_check
      _
    $region19: #{tpu_custom_call.1} parent=1 // pred_check_branch
      %34 = sbr.rel (0) target = $region21
    $region20: #{tpu_custom_call.1} parent=1 // pred_region
      %s36 = ssub.s32 16, 16
      %37 = vsyncadd [#allocation6], %s36
      %s39 = sshll.u32 [#allocation5], 4
      %s40 = int_to_ptr.vmem [resolvable:$true] %s39
      %42 = dma.hbm_to_vmem [thread:$0]  %s4, 16, %s40, [#allocation6]
    $region21: #{tpu_custom_call.1} parent=1 // pred_fallthru
      _
    // Predicated region
    $region22: #{tpu_custom_call.1} parent=1 // pred_check
      _
    $region23: #{tpu_custom_call.1} parent=1 // pred_check_branch
      %44 = sbr.rel (0) target = $region25
    $region24: #{tpu_custom_call.1} parent=1 // pred_region
      _
    $region25: #{tpu_custom_call.1} parent=1 // pred_fallthru
      _
    // Predicated region
    $region26: #{tpu_custom_call.1} parent=1 // pred_check
      _
    $region27: #{tpu_custom_call.1} parent=1 // pred_check_branch
      %46 = sbr.rel (0) target = $region29
    $region28: #{tpu_custom_call.1} parent=1 // pred_region
      _
    $region29: #{tpu_custom_call.1} parent=1 // pred_fallthru
      _
    // Predicated region
    $region30: #{tpu_custom_call.1} parent=1 // pred_check
      _
    $region31: #{tpu_custom_call.1} parent=1 // pred_check_branch
      %48 = sbr.rel (0) target = $region33
    $region32: #{tpu_custom_call.1} parent=1 // pred_region
      %49 = dma.done [#allocation3], 128
    $region33: #{tpu_custom_call.1} parent=1 // pred_fallthru
      _
    // Predicated region
    $region34: #{tpu_custom_call.1} parent=1 // pred_check
      _
    $region35: #{tpu_custom_call.1} parent=1 // pred_check_branch
      %51 = sbr.rel (0) target = $region37
    $region36: #{tpu_custom_call.1} parent=1 // pred_region
      %52 = dma.done [#allocation6], 16
    $region37: #{tpu_custom_call.1} parent=1 // pred_fallthru
      _
    %v54 = vld [vmem:[%s0] sm:$0xff]
    %v55 = vpack.c.bf16 %v54, %v54
    %v56 = vld [vmem:[#allocation2] sm:$0xf]
    %v57 = vld [vmem:[#allocation2 + $0x4] sm:$0xf]
    %v58 = vld [vmem:[%s2] sm:$0x1]
    %v60 = vlaneseq
    %v61 = vshrl.u32 %v60, 7
    %v62 = vsub.s32 0, %v61
    %v63 = vrot.slane %v58, %v62
    %v67 = vunpack.c.l.b16 %v56
    %v68 = vunpack.c.l.b16 %v57
    %v69 = vpack.c.b16 %v68, %v67
    %vm71 = vcmask 130048
    %v73 = vsel %vm71, %v55, 0
    %75 = vmatprep.subr.bf16.mxu0 0
    %76 = vmatpush1.bf16.msra.mxu0 0
    %77 = vmatprep.subr.bf16.mxu0 0
    %78 = vmatpush1.bf16.msra.mxu0 0
    %79 = vmatprep.subr.bf16.mxu0 0
    %80 = vmatpush1.bf16.msra.mxu0 0
    %81 = vmatprep.subr.bf16.mxu0 0
    %82 = vmatpush1.bf16.msra.mxu0 0
    %83 = vmatprep.subr.bf16.mxu0 0
    %84 = vmatpush1.bf16.msra.mxu0 0
    %85 = vmatprep.subr.bf16.mxu0 0
    %86 = vmatpush1.bf16.msra.mxu0 0
    %87 = vmatprep.subr.bf16.mxu0 0
    %88 = vmatpush1.bf16.msra.mxu0 0
    %89 = vmatprep.subr.bf16.mxu0 0
    %90 = vmatpush1.bf16.msra.mxu0 %v69
    %91 = vmatprep.subr.bf16.mxu0 0
    %92 = vmatpush2.bf16.msra.mxu0 0
    %93 = vmatprep.subr.bf16.mxu0 0
    %94 = vmatpush2.bf16.msra.mxu0 0
    %95 = vmatprep.subr.bf16.mxu0 0
    %96 = vmatpush2.bf16.msra.mxu0 0
    %97 = vmatprep.subr.bf16.mxu0 0
    %98 = vmatpush2.bf16.msra.mxu0 0
    %99 = vmatprep.subr.bf16.mxu0 0
    %100 = vmatpush2.bf16.msra.mxu0 0
    %101 = vmatprep.subr.bf16.mxu0 0
    %102 = vmatpush2.bf16.msra.mxu0 0
    %103 = vmatprep.subr.bf16.mxu0 0
    %104 = vmatpush2.bf16.msra.mxu0 0
    %105 = vmatprep.subr.bf16.mxu0 0
    %106 = vmatpush2.bf16.msra.mxu0 0
    %107 = vmatprep.mubr.bf16.mxu0 0
    %108 = vmatmul.mubr.bf16.gmra.mxu0 %v73
    %v109 = vpop.f32.mrf.mxu0
    %v110 = vadd.f32 %v63, %v109
    %v111 = vpop.f32.mrf.mxu0
    %v112 = vpop.f32.mrf.mxu0
    %v113 = vpop.f32.mrf.mxu0
    %114 = vdwg.mxu0
    %v115 = vtanh.pop %v110
    %v116 = vpack.c.bf16 %v115, %v115
    %v117 = vld [vmem:[%s3] sm:$0xf]
    %v118 = vld [vmem:[%s3 + $0x4] sm:$0xf]
    %v119 = vld [vmem:[%s3 + $0x8] sm:$0xf]
    %v120 = vld [vmem:[%s3 + $0xc] sm:$0xf]
    %v121 = vld [vmem:[#allocation5] sm:$0x1]
    %v123 = vlaneseq
    %v124 = vshrl.u32 %v123, 7
    %v125 = vsub.s32 0, %v124
    %v126 = vrot.slane %v121, %v125
    %v132 = vunpack.c.l.b16 %v117
    %v133 = vunpack.c.l.b16 %v118
    %v134 = vunpack.c.l.b16 %v119
    %v135 = vunpack.c.l.b16 %v120
    %v136 = vpack.c.b16 %v133, %v132
    %v137 = vpack.c.b16 %v135, %v134
    %vm140 = vcmask 261120
    %v142 = vsel %vm140, %v116, 0
    %144 = vmatprep.subr.bf16.mxu0 0
    %145 = vmatpush1.bf16.msra.mxu0 0
    %146 = vmatprep.subr.bf16.mxu0 0
    %147 = vmatpush1.bf16.msra.mxu0 0
    %148 = vmatprep.subr.bf16.mxu0 0
    %149 = vmatpush1.bf16.msra.mxu0 0
    %150 = vmatprep.subr.bf16.mxu0 0
    %151 = vmatpush1.bf16.msra.mxu0 0
    %152 = vmatprep.subr.bf16.mxu0 0
    %153 = vmatpush1.bf16.msra.mxu0 0
    %154 = vmatprep.subr.bf16.mxu0 0
    %155 = vmatpush1.bf16.msra.mxu0 0
    %156 = vmatprep.subr.bf16.mxu0 0
    %157 = vmatpush1.bf16.msra.mxu0 %v137
    %158 = vmatprep.subr.bf16.mxu0 0
    %159 = vmatpush1.bf16.msra.mxu0 %v136
    %160 = vmatprep.subr.bf16.mxu0 0
    %161 = vmatpush2.bf16.msra.mxu0 0
    %162 = vmatprep.subr.bf16.mxu0 0
    %163 = vmatpush2.bf16.msra.mxu0 0
    %164 = vmatprep.subr.bf16.mxu0 0
    %165 = vmatpush2.bf16.msra.mxu0 0
    %166 = vmatprep.subr.bf16.mxu0 0
    %167 = vmatpush2.bf16.msra.mxu0 0
    %168 = vmatprep.subr.bf16.mxu0 0
    %169 = vmatpush2.bf16.msra.mxu0 0
    %170 = vmatprep.subr.bf16.mxu0 0
    %171 = vmatpush2.bf16.msra.mxu0 0
    %172 = vmatprep.subr.bf16.mxu0 0
    %173 = vmatpush2.bf16.msra.mxu0 0
    %174 = vmatprep.subr.bf16.mxu0 0
    %175 = vmatpush2.bf16.msra.mxu0 0
    %176 = vmatprep.mubr.bf16.mxu0 0
    %177 = vmatmul.mubr.bf16.gmra.mxu0 %v142
    %v178 = vpop.f32.mrf.mxu0
    %v179 = vadd.f32 %v126, %v178
    %v180 = vpop.f32.mrf.mxu0
    %v181 = vpop.f32.mrf.mxu0
    %v182 = vpop.f32.mrf.mxu0
    %183 = vdwg.mxu0
    %v184 = vtanh.pop %v179
    %v185 = vpack.c.bf16 %v184, %v184
    %v186 = vld [vmem:[%s5] sm:$0xf]
    %v187 = vld [vmem:[%s5 + $0x4] sm:$0xf]
    %v188 = vld [vmem:[%s5 + $0x8] sm:$0xf]
    %v189 = vld [vmem:[%s5 + $0xc] sm:$0xf]
    %v190 = vld [vmem:[%s6] sm:$0x1]
    %v192 = vlaneseq
    %v193 = vshrl.u32 %v192, 7
    %v194 = vsub.s32 0, %v193
    %v195 = vrot.slane %v190, %v194
    %v201 = vunpack.c.l.b16 %v186
    %v202 = vunpack.c.l.b16 %v187
    %v203 = vunpack.c.l.b16 %v188
    %v204 = vunpack.c.l.b16 %v189
    %v205 = vpack.c.b16 %v202, %v201
    %v206 = vpack.c.b16 %v204, %v203
    %v210 = vsel %vm140, %v185, 0
    %212 = vmatprep.subr.bf16.mxu0 0
    %213 = vmatpush1.bf16.msra.mxu0 0
    %214 = vmatprep.subr.bf16.mxu0 0
    %215 = vmatpush1.bf16.msra.mxu0 0
    %216 = vmatprep.subr.bf16.mxu0 0
    %217 = vmatpush1.bf16.msra.mxu0 0
    %218 = vmatprep.subr.bf16.mxu0 0
    %219 = vmatpush1.bf16.msra.mxu0 0
    %220 = vmatprep.subr.bf16.mxu0 0
    %221 = vmatpush1.bf16.msra.mxu0 0
    %222 = vmatprep.subr.bf16.mxu0 0
    %223 = vmatpush1.bf16.msra.mxu0 0
    %224 = vmatprep.subr.bf16.mxu0 0
    %225 = vmatpush1.bf16.msra.mxu0 %v206
    %226 = vmatprep.subr.bf16.mxu0 0
    %227 = vmatpush1.bf16.msra.mxu0 %v205
    %228 = vmatprep.subr.bf16.mxu0 0
    %229 = vmatpush2.bf16.msra.mxu0 0
    %230 = vmatprep.subr.bf16.mxu0 0
    %231 = vmatpush2.bf16.msra.mxu0 0
    %232 = vmatprep.subr.bf16.mxu0 0
    %233 = vmatpush2.bf16.msra.mxu0 0
    %234 = vmatprep.subr.bf16.mxu0 0
    %235 = vmatpush2.bf16.msra.mxu0 0
    %236 = vmatprep.subr.bf16.mxu0 0
    %237 = vmatpush2.bf16.msra.mxu0 0
    %238 = vmatprep.subr.bf16.mxu0 0
    %239 = vmatpush2.bf16.msra.mxu0 0
    %240 = vmatprep.subr.bf16.mxu0 0
    %241 = vmatpush2.bf16.msra.mxu0 0
    %242 = vmatprep.subr.bf16.mxu0 0
    %243 = vmatpush2.bf16.msra.mxu0 0
    %244 = vmatprep.mubr.bf16.mxu0 0
    %245 = vmatmul.mubr.bf16.gmra.mxu0 %v210
    %v246 = vpop.f32.mrf.mxu0
    %v247 = vadd.f32 %v195, %v246
    %v248 = vpop.f32.mrf.mxu0
    %v249 = vpop.f32.mrf.mxu0
    %v250 = vpop.f32.mrf.mxu0
    %251 = vdwg.mxu0
    %vm252 = vcmask 64512
    %253 = vst.msk [vmem:[#allocation7] sm:$0xff] %vm252, %v247
    // Predicated region
    $region38: #{tpu_custom_call.1} parent=1 // pred_check
      _
    $region39: #{tpu_custom_call.1} parent=1 // pred_check_branch
      %255 = sbr.rel (0) target = $region41
    $region40: #{tpu_custom_call.1} parent=1 // pred_region
      %s257 = ssub.s32 128, 128
      %258 = vsyncadd [#allocation4], %s257
      %s260 = sshll.u32 [#allocation7], 4
      %s261 = int_to_ptr.vmem [resolvable:$true] %s260
      %263 = dma.vmem_to_hbm [thread:$0]  %s261, 128, %s7, [#allocation4]
    $region41: #{tpu_custom_call.1} parent=1 // pred_fallthru
      _
    // Predicated region
    $region42: #{tpu_custom_call.1} parent=1 // pred_check
      _
    $region43: #{tpu_custom_call.1} parent=1 // pred_check_branch
      %265 = sbr.rel (0) target = $region45
    $region44: #{tpu_custom_call.1} parent=1 // pred_region
      %266 = dma.done [#allocation4], 128
    $region45: #{tpu_custom_call.1} parent=1 // pred_fallthru
      _
    %267 = vsyncpa [#allocation3], 1
    %268 = vsyncpa [#allocation6], 1
    %269 = vsyncpa [#allocation4], 1

</llo_original>
